<compile_context>
chip_gen: v7x
topology: tpu7x:2x2x1
jax: 0.10.0
libtpu: 0.0.40
codegen_flags: <defaults>
</compile_context>

<pallas_src>
import functools

import jax
import jax.numpy as jnp
from jax.experimental import pallas as pl
from jax.experimental.pallas import tpu as pltpu


_LANES = 128
_SUBLANES = 8
# ~2 MiB per block; with input + output each double-buffered this is ~8 MiB
# of VMEM, comfortably inside the default scoped limits on v5e/v6e/v7x.
_TARGET_TILE_BYTES = 2 * 1024 * 1024
# Prefer wide, lane-dense slabs (unmasked full-vreg stores on the output).
_COL_CANDIDATES = (2048, 1024, 512, 256, 128)


# ----------------------------- Pallas kernel ------------------------------

def _neg_scale_kernel(neg_lam_ref, g_ref, o_ref):
    # dx = (-lambda) * g.  Lambda is pre-negated on the host and kept as a
    # float32 scalar in SMEM (the 32-bit scalar path); the multiply runs on
    # the VPU and is fully hidden behind the HBM DMA (memory-bound kernel).
    o_ref[...] = (neg_lam_ref[0] * g_ref[...]).astype(o_ref.dtype)


# --------------------------- layout / launcher -----------------------------

def _choose_layout(n, itemsize):
    """Pick a lane-dense 2-D view (rows, cols), a row tile, and padding."""
    cols = None
    for c in _COL_CANDIDATES:
        if n % c == 0:
            cols = c
            break
    pad = 0
    if cols is None:
        # Rare fallback: element count not divisible by 128 -> pad the flat
        # view to the next multiple of 128 lanes.  Partial row blocks at the
        # end of the grid are legal (masked stores), so no (8,128) padding
        # of the row dimension is needed.
        cols = _LANES
        pad = (-n) % cols
    rows = (n + pad) // cols

    rows_per_tile = max(_SUBLANES, _TARGET_TILE_BYTES // (cols * itemsize))
    if rows_per_tile >= rows:
        block_rows = rows  # single block; full-dim block shape is always legal
    else:
        block_rows = (rows_per_tile // _SUBLANES) * _SUBLANES  # sublane aligned
    return rows, cols, block_rows, pad


def _neg_scale(g, lambda_):
    n = g.size
    if n == 0:
        return g
    rows, cols, block_rows, pad = _choose_layout(n, jnp.dtype(g.dtype).itemsize)

    flat = g.reshape(-1)          # reshape of a contiguous buffer is free
    if pad:
        flat = jnp.pad(flat, (0, pad))
    g2d = flat.reshape(rows, cols)

    # Pre-negated lambda as a float32 runtime scalar in SMEM: precision-safe
    # for bf16/fp8 grads and avoids a recompile per lambda value.
    neg_lam = jnp.asarray(-float(lambda_), dtype=jnp.float32).reshape((1,))

    grid = (pl.cdiv(rows, block_rows),)
    out2d = pl.pallas_call(
        _neg_scale_kernel,
        out_shape=jax.ShapeDtypeStruct((rows, cols), g.dtype),
        grid_spec=pltpu.PrefetchScalarGridSpec(
            num_scalar_prefetch=0,
            grid=grid,
            in_specs=[
                pl.BlockSpec(memory_space=pltpu.MemorySpace.SMEM),  # -lambda
                pl.BlockSpec((block_rows, cols), lambda i: (i, 0)),
            ],
            out_specs=pl.BlockSpec((block_rows, cols), lambda i: (i, 0)),
        ),
        compiler_params=pltpu.CompilerParams(
            dimension_semantics=("parallel",)),  # shards across v7x's 2 TCs
    )(neg_lam, g2d)

    out_flat = out2d.reshape(-1)
    if pad:
        out_flat = out_flat[:n]
    return out_flat.reshape(g.shape)


# ----------------------- GradientReversal (custom_vjp) ---------------------

@functools.partial(jax.custom_vjp, nondiff_argnums=(1,))
def gradient_reversal(x, lambda_=1.0):
    # Forward is the identity (PyTorch's x.clone(); a copy is unnecessary in JAX).
    return x


def _grl_fwd(x, lambda_):
    return x, None


def _grl_bwd(lambda_, _, g):
    return (_neg_scale(g, lambda_),)


gradient_reversal.defvjp(_grl_fwd, _grl_bwd)


class GradientReversal:
    """JAX/Pallas counterpart of the PyTorch GradientReversal module."""

    def __init__(self, lambda_=1.0):
        self.lambda_ = float(lambda_)

    def __call__(self, x):
        return gradient_reversal(x, self.lambda_)


# ---------------------------------- main -----------------------------------

if __name__ == "__main__":
    key = jax.random.PRNGKey(0)
    x = jax.random.normal(key, (2, 4, 16, 16), dtype=jnp.float32)  # NCHW

    layer = GradientReversal(lambda_=1.0)

    # Forward: identity.
    y = layer(x)
    y = jax.block_until_ready(y)
    assert y.shape == x.shape and y.dtype == x.dtype
    assert bool(jnp.allclose(y, x))

    # Backward: grads reversed, i.e. -lambda * upstream (runs the Pallas kernel).
    out, vjp_fn = jax.vjp(lambda t: gradient_reversal(t, 1.0), x)
    ct = jnp.ones_like(out)
    (dx,) = vjp_fn(ct)
    dx = jax.block_until_ready(dx)
    assert bool(jnp.allclose(dx, -1.0 * ct))

    # A second lambda to confirm the runtime scalar path (no recompile needed).
    out2, vjp_fn2 = jax.vjp(lambda t: gradient_reversal(t, 0.5), x)
    (dx2,) = vjp_fn2(ct)
    dx2 = jax.block_until_ready(dx2)
    assert bool(jnp.allclose(dx2, -0.5 * ct))

    # Odd-sized gradient exercises the pad-to-lane fallback path.
    x_odd = jax.random.normal(jax.random.PRNGKey(1), (3, 7, 5), dtype=jnp.float32)
    out3, vjp_fn3 = jax.vjp(lambda t: gradient_reversal(t, 2.0), x_odd)
    (dx3,) = vjp_fn3(jnp.ones_like(out3))
    dx3 = jax.block_until_ready(dx3)
    assert bool(jnp.allclose(dx3, -2.0 * jnp.ones_like(out3)))

    print("KERNEL_OK")
</pallas_src>

<mosaic_0001>
module attributes {stable_mosaic.version = 11 : i64} {
  func.func @_neg_scale_kernel(%arg0: i32, %arg1: memref<1xf32, #tpu.memory_space<smem>>, %arg2: memref<1x2048xf32, #tpu.memory_space<vmem>>, %arg3: memref<1x2048xf32, #tpu.memory_space<vmem>>) attributes {dimension_semantics = [#tpu.dimension_semantics<parallel>], iteration_bounds = array<i64: 1>, scalar_prefetch = 0 : i64, scratch_operands = 0 : i64, tpu.core_type = #tpu.core_type<tc>, window_params = [{transform_indices = @transform_0, window_bounds = array<i64: 1>}, {transform_indices = @transform_1, window_bounds = array<i64: 1, 2048>}, {transform_indices = @transform_2, window_bounds = array<i64: 1, 2048>}]} {
    %c0 = arith.constant 0 : index
    %0 = memref.load %arg1[%c0] : memref<1xf32, #tpu.memory_space<smem>>
    %c0_0 = arith.constant 0 : index
    %c0_1 = arith.constant 0 : index
    %1 = vector.load %arg2[%c0_0, %c0_1] : memref<1x2048xf32, #tpu.memory_space<vmem>>, vector<1x2048xf32>
    %2 = vector.broadcast %0 : f32 to vector<1x2048xf32>
    %3 = arith.mulf %2, %1 : vector<1x2048xf32>
    %c0_2 = arith.constant 0 : index
    %c0_3 = arith.constant 0 : index
    %4 = vector.load %arg3[%c0_2, %c0_3] : memref<1x2048xf32, #tpu.memory_space<vmem>>, vector<1x2048xf32>
    tpu.vector_store %arg3[%c0_2, %c0_3], %3 {strides = array<i32>} : memref<1x2048xf32, #tpu.memory_space<vmem>>, vector<1x2048xf32>,
    return
  }
  func.func @transform_0(%arg0: i32) -> i32 {
    %c0_i32 = arith.constant 0 : i32
    %c0_i32_0 = arith.constant 0 : i32
    return %c0_i32 : i32
  }
  func.func @transform_1(%arg0: i32) -> (i32, i32) {
    %c0_i32 = arith.constant 0 : i32
    %c0_i32_0 = arith.constant 0 : i32
    return %arg0, %c0_i32 : i32, i32
  }
  func.func @transform_2(%arg0: i32) -> (i32, i32) {
    %c0_i32 = arith.constant 0 : i32
    %c0_i32_0 = arith.constant 0 : i32
    return %arg0, %c0_i32 : i32, i32
  }
}

</mosaic_0001>

<llo_original>
// kernel: tpu_custom_call.1
$region0: #{tpu_custom_call.1}
  #allocation0 [shape = 'u32[]', space=smem, size = 0x4, offset = 0x4, fixed_abs, tag = 'smem constant byte address 0x4 - core index']
  #allocation1 [shape = 'u32[144,128]{1,0:T(1,128)}', space=vmem, size = 0x12000, scoped, tag = 'internal scratch']
  #allocation2 [shape = 'f32[1]{0:T(128)S(6)}', space=smem, size = 0x200, scoped, tag = 'scoped memory for tpu_custom_call.1']
  %s0 = inlined_call_operand.<no memory space> [shape: f32[1], index: 0, kind: input, shape index: {}]
  %s1 = inlined_call_operand.hbm [shape: f32[1,2048], index: 1, kind: input, shape index: {}]
  %s2 = inlined_call_operand.hbm [shape: f32[1,2048], index: 2, kind: output, shape index: {}]
  %s3 = sld [smem:[#allocation0]]
  $region22: #{tpu_custom_call.1} parent=0
    _
  %s5 = ssub.s32 1, %s3
  %s6 = scalar_select 0, %s5, %s3
  %7 = sst [smem:[#allocation2]] %s0
  $region1: #{tpu_custom_call.1} parent=0
    #allocation3 [shape = 'u8[8192]{0}', space=vmem, size = 0x2000, scoped, tag = 'input window, operand 1, single buffered']
    #allocation4 [shape = 's32[1]{0}', space=sflag, size = 0x4, scoped, tag = 'scoped memory for tpu_custom_call.1']
    #allocation5 [shape = 's32[1]{0}', space=sflag, size = 0x4, scoped, tag = 'scoped memory for tpu_custom_call.1']
    #allocation6 [shape = 'u8[8192]{0}', space=vmem, size = 0x2000, scoped, tag = 'output window, operand 0, single buffered']
    %8 = vsyncpa [#allocation4], 0
    %9 = vsyncpa [#allocation5], 0
    // Predicated region
    $region2: #{tpu_custom_call.1} parent=1 // pred_check
      _
    $region3: #{tpu_custom_call.1} parent=1 // pred_check_branch
      %11 = sbr.rel (0) target = $region5
    $region4: #{tpu_custom_call.1} parent=1 // pred_region
      _
    $region5: #{tpu_custom_call.1} parent=1 // pred_fallthru
      _
    // Predicated region
    $region6: #{tpu_custom_call.1} parent=1 // pred_check
      _
    $region7: #{tpu_custom_call.1} parent=1 // pred_check_branch
      %13 = sbr.rel (0) target = $region9
    $region8: #{tpu_custom_call.1} parent=1 // pred_region
      %s15 = ssub.s32 256, 256
      %16 = vsyncadd [#allocation4], %s15
      %s18 = sshll.u32 [#allocation3], 4
      %s19 = int_to_ptr.vmem [resolvable:$true] %s18
      %21 = dma.hbm_to_vmem [thread:$0]  %s1, 256, %s19, [#allocation4]
    $region9: #{tpu_custom_call.1} parent=1 // pred_fallthru
      _
    // Predicated region
    $region10: #{tpu_custom_call.1} parent=1 // pred_check
      _
    $region11: #{tpu_custom_call.1} parent=1 // pred_check_branch
      %23 = sbr.rel (0) target = $region13
    $region12: #{tpu_custom_call.1} parent=1 // pred_region
      %24 = dma.done [#allocation4], 256
    $region13: #{tpu_custom_call.1} parent=1 // pred_fallthru
      _
    %s25 = sld [smem:[#allocation2]]
    %v26 = vld [vmem:[#allocation3] sm:$0xff]
    %v27 = vld [vmem:[#allocation3 + $0x8] sm:$0xff]
    %v28 = vstv %s25
    %v29 = vmul.f32 %v28, %v26
    %v30 = vmul.f32 %v28, %v27
    %31 = vst [vmem:[#allocation6] sm:$0xff] %v29
    %32 = vst [vmem:[#allocation6 + $0x8] sm:$0xff] %v30
    // Predicated region
    $region14: #{tpu_custom_call.1} parent=1 // pred_check
      _
    $region15: #{tpu_custom_call.1} parent=1 // pred_check_branch
      %34 = sbr.rel (0) target = $region17
    $region16: #{tpu_custom_call.1} parent=1 // pred_region
      %s36 = ssub.s32 256, 256
      %37 = vsyncadd [#allocation5], %s36
      %s39 = sshll.u32 [#allocation6], 4
      %s40 = int_to_ptr.vmem [resolvable:$true] %s39
      %42 = dma.vmem_to_hbm [thread:$0]  %s40, 256, %s2, [#allocation5]
    $region17: #{tpu_custom_call.1} parent=1 // pred_fallthru
      _
    // Predicated region
    $region18: #{tpu_custom_call.1} parent=1 // pred_check
      _
    $region19: #{tpu_custom_call.1} parent=1 // pred_check_branch
      %44 = sbr.rel (0) target = $region21
    $region20: #{tpu_custom_call.1} parent=1 // pred_region
      %45 = dma.done [#allocation5], 256
    $region21: #{tpu_custom_call.1} parent=1 // pred_fallthru
      _
    %46 = vsyncpa [#allocation4], 1
    %47 = vsyncpa [#allocation5], 1

</llo_original>
